<compile_context>
chip_gen: v7x
topology: tpu7x:2x2x1
jax: 0.10.0
libtpu: 0.0.40
codegen_flags: <defaults>
</compile_context>

<pallas_src>
import jax
import jax.numpy as jnp
from jax import lax
from jax.experimental import pallas as pl
from jax.experimental.pallas import tpu as pltpu

# Contract x's dim 1 with weight's dim 1 ("NT" matmul): consumes the PyTorch
# (C, K) nn.Linear weight layout directly on the MXU.
_NT_DIMS = (((1,), (1,)), ((), ()))


def _proj_kernel(x_ref, w_ref, b_ref, o_ref):
    # x_ref: (tm, K)   w_ref: (tn, K)   b_ref: (1, tn) f32   o_ref: (tm, tn)
    acc = lax.dot_general(x_ref[...], w_ref[...], _NT_DIMS,
                          preferred_element_type=jnp.float32)
    o_ref[...] = (acc + b_ref[...]).astype(o_ref.dtype)


def _round_up(n, m):
    return ((n + m - 1) // m) * m


def _generation_params():
    """Returns (tile budget bytes, vmem_limit_bytes, two_tensorcores)."""
    vmem = None
    try:
        vmem = pltpu.get_tpu_info().vmem_capacity_bytes
    except Exception:
        pass
    if vmem is None or vmem <= (64 << 20):
        # v7x-class (64 MiB physical / 32 MiB scoped, 2 TCs) or unknown:
        # stay conservative so the unbudgeted compiler scratch never spills.
        return 20 << 20, 32 << 20, True
    # v5e / v6e: 128 MiB physical VMEM, single TensorCore per chip.
    return 48 << 20, 64 << 20, False


def _spec(shape, index_map, *, single_buffered=False):
    """BlockSpec helper; single-buffers constant-index (resident) operands."""
    if single_buffered and hasattr(pl, "Buffered"):
        try:
            return pl.BlockSpec(shape, index_map, pipeline_mode=pl.Buffered(1))
        except TypeError:  # older BlockSpec without pipeline_mode
            pass
    return pl.BlockSpec(shape, index_map)


def _choose_tn(N_pad, K, in_bytes, budget_bytes):
    """Tile the embed dim only when a resident (N,K) weight slab is too big."""
    limit = budget_bytes // 3
    if N_pad <= 256 or N_pad * K * in_bytes <= limit:
        return N_pad
    tn = 256                       # multiple of 256: matches MXU output width
    while 2 * tn <= N_pad and 2 * tn * K * in_bytes <= limit:
        tn *= 2
    return tn


def _choose_tm(M, K, tn, in_bytes, out_bytes, budget_bytes, *,
               weight_resident, two_cores):
    """Largest power-of-two M tile whose pipelined footprint fits the budget."""
    w_bufs = 1 if weight_resident else 2

    def est(t):
        return (2 * t * K * in_bytes        # patch tiles (double-buffered)
                + 2 * t * tn * out_bytes    # output tiles (double-buffered)
                + w_bufs * tn * K * in_bytes  # weight slab
                + 2 * tn * 4                # bias (f32)
                + 2 * t * tn * 4)           # in-kernel f32 dot result + cast tmp

    tm = 1024
    while tm > 128 and est(tm) > budget_bytes:
        tm //= 2
    sub = 16 if in_bytes < 4 else 8
    tm = min(tm, _round_up(M, sub))
    # v7x has two TensorCores sharing the "parallel" grid: avoid an odd,
    # small step count (e.g. 3 -> 2:1 tile split) by shrinking tm one notch.
    if two_cores:
        steps = pl.cdiv(M, tm)
        if 1 < steps <= 7 and steps % 2 == 1 and tm > 2 * sub:
            tm //= 2
    return tm


def _linear_pallas(patches, weight, bias2d, *, out_dtype):
    """patches: (M, K), weight: (N, K) [PyTorch layout], bias2d: (1, N) f32."""
    M, K = patches.shape
    N = weight.shape[0]
    in_bytes = patches.dtype.itemsize
    out_bytes = jnp.dtype(out_dtype).itemsize

    budget, vmem_limit, two_cores = _generation_params()
    tn = _choose_tn(N, K, in_bytes, budget)
    weight_resident = (tn == N)
    tm = _choose_tm(M, K, tn, in_bytes, out_bytes, budget,
                    weight_resident=weight_resident, two_cores=two_cores)
    gm = pl.cdiv(M, tm)
    gn = pl.cdiv(N, tn)

    cost = pl.CostEstimate(
        flops=2 * M * K * N,
        transcendentals=0,
        bytes_accessed=(gn * M * K * in_bytes + N * K * in_bytes
                        + M * N * out_bytes + N * 4),
    )

    return pl.pallas_call(
        _proj_kernel,
        out_shape=jax.ShapeDtypeStruct((M, N), out_dtype),
        grid_spec=pltpu.PrefetchScalarGridSpec(
            num_scalar_prefetch=0,
            # N outer, M inner: each weight slab stays resident across the
            # whole M sweep; with gn == 1 this degenerates to the 1-D layout.
            grid=(gn, gm),
            in_specs=[
                _spec((tm, K), lambda j, i: (i, 0)),              # patch rows
                _spec((tn, K), lambda j, i: (j, 0),               # weight slab
                      single_buffered=weight_resident),
                _spec((1, tn), lambda j, i: (0, j),               # bias
                      single_buffered=weight_resident),
            ],
            out_specs=pl.BlockSpec((tm, tn), lambda j, i: (i, j)),
        ),
        compiler_params=pltpu.CompilerParams(
            dimension_semantics=("parallel", "parallel"),
            vmem_limit_bytes=vmem_limit,
            allow_input_fusion=[True, False, False],
        ),
        cost_estimate=cost,
    )(patches, weight, bias2d)


def patch_embedding_forward(x, weight, bias, patch_size, *,
                            compute_dtype=jnp.bfloat16):
    """Mirror of PatchEmbedding.forward.

    x:      (B, C_in, H, W)              -- NCHW, like PyTorch
    weight: (C, patch_size**2 * C_in)    -- PyTorch nn.Linear weight layout
    bias:   (C,)
    returns (B, num_patches, C) in x's dtype.

    compute_dtype=jnp.bfloat16 (default) casts the matmul operands only; the
    MXU still accumulates in f32 and bias is applied in f32.  Pass
    compute_dtype=None to keep operands in the input dtype.
    """
    B, C_in, H, W = x.shape
    ps = patch_size
    ph, pw = H // ps, W // ps
    K = C_in * ps * ps
    C = weight.shape[0]
    out_dtype = x.dtype

    if compute_dtype is not None:
        x = x.astype(compute_dtype)
        weight = weight.astype(compute_dtype)

    # Patchify glue -- identical index math to the torch permute(0,2,4,1,3,5).
    x6 = x.reshape(B, C_in, ph, ps, pw, ps)
    patches = jnp.transpose(x6, (0, 2, 4, 1, 3, 5)).reshape(B * ph * pw, K)

    # Pad the embed dim to a multiple of 128 -> unmasked lane-dense stores.
    N_pad = _round_up(C, 128)
    # Pad K to a multiple of 128 lanes when the overhead is small (<= 1/8),
    # e.g. 588 -> 640; tiny K (e.g. 64) is left alone to avoid inflating HBM
    # traffic on a memory-bound kernel.
    K_pad = K
    if K % 128 != 0 and (_round_up(K, 128) - K) * 8 <= K:
        K_pad = _round_up(K, 128)

    if K_pad != K:
        patches = jnp.pad(patches, ((0, 0), (0, K_pad - K)))
    if N_pad != C or K_pad != K:
        weight = jnp.pad(weight, ((0, N_pad - C), (0, K_pad - K)))
    bias2d = bias.astype(jnp.float32)
    if N_pad != C:
        bias2d = jnp.pad(bias2d, (0, N_pad - C))
    bias2d = bias2d.reshape(1, N_pad)

    out = _linear_pallas(patches, weight, bias2d, out_dtype=out_dtype)
    if N_pad != C:
        out = out[:, :C]
    return out.reshape(B, ph * pw, C)


if __name__ == "__main__":
    # Small shapes consistent with the module.
    B, C_in, H, W = 2, 4, 16, 16
    patch_size = 4
    C = 32
    patch_dim = patch_size * patch_size * C_in   # 64

    key = jax.random.PRNGKey(0)
    kx, kw, kb = jax.random.split(key, 3)

    x = jax.random.normal(kx, (B, C_in, H, W), dtype=jnp.float32)

    # Deterministic nn.Linear-style init: U(-1/sqrt(in), 1/sqrt(in)).
    bound = 1.0 / (patch_dim ** 0.5)
    weight = jax.random.uniform(kw, (C, patch_dim), jnp.float32, -bound, bound)
    bias = jax.random.uniform(kb, (C,), jnp.float32, -bound, bound)

    # Pure-JAX reference of the same math.
    ref = x.reshape(B, C_in, H // patch_size, patch_size,
                    W // patch_size, patch_size)
    ref = jnp.transpose(ref, (0, 2, 4, 1, 3, 5)).reshape(B, -1, patch_dim)
    ref = ref @ weight.T + bias

    # Default path: bf16 operands, f32 accumulation -> loose tolerance only
    # for the operand quantisation.
    out = jax.block_until_ready(
        patch_embedding_forward(x, weight, bias, patch_size))
    assert out.shape == (B, (H // patch_size) * (W // patch_size), C)
    assert out.dtype == x.dtype
    assert jnp.allclose(out, ref, atol=5e-2, rtol=5e-2)

    # Exact f32-operand path.
    out_f32 = jax.block_until_ready(
        patch_embedding_forward(x, weight, bias, patch_size,
                                compute_dtype=None))
    assert out_f32.shape == out.shape
    assert jnp.allclose(out_f32, ref, atol=1e-4, rtol=1e-4)

    print("KERNEL_OK")
</pallas_src>

<mosaic_0001>
module attributes {stable_mosaic.version = 11 : i64} {
  func.func @_proj_kernel(%arg0: i32, %arg1: i32, %arg2: memref<32x64xbf16, #tpu.memory_space<vmem>>, %arg3: memref<128x64xbf16, #tpu.memory_space<vmem>>, %arg4: memref<1x128xf32, #tpu.memory_space<vmem>>, %arg5: memref<32x128xf32, #tpu.memory_space<vmem>>) attributes {dimension_semantics = [#tpu.dimension_semantics<parallel>, #tpu.dimension_semantics<parallel>], iteration_bounds = array<i64: 1, 1>, scalar_prefetch = 0 : i64, scratch_operands = 0 : i64, tpu.core_type = #tpu.core_type<tc>, window_params = [{transform_indices = @transform_0, window_bounds = array<i64: 32, 64>}, {pipeline_mode = #tpu.pipeline_mode<synchronous>, transform_indices = @transform_1, window_bounds = array<i64: 128, 64>}, {pipeline_mode = #tpu.pipeline_mode<synchronous>, transform_indices = @transform_2, window_bounds = array<i64: 1, 128>}, {transform_indices = @transform_3, window_bounds = array<i64: 32, 128>}]} {
    %c0 = arith.constant 0 : index
    %c0_0 = arith.constant 0 : index
    %0 = vector.load %arg2[%c0, %c0_0] : memref<32x64xbf16, #tpu.memory_space<vmem>>, vector<32x64xbf16>
    %c0_1 = arith.constant 0 : index
    %c0_2 = arith.constant 0 : index
    %1 = vector.load %arg3[%c0_1, %c0_2] : memref<128x64xbf16, #tpu.memory_space<vmem>>, vector<128x64xbf16>
    %cst = arith.constant dense<0.000000e+00> : vector<32x128xf32>
    %2 = tpu.matmul %0, %1, %cst {dimension_numbers = #tpu.dot_dimension_numbers<[1], [1], [0], [0], [0, 0, 1, 0], [], []>} : vector<32x64xbf16>, vector<128x64xbf16>, vector<32x128xf32> -> vector<32x128xf32>
    %c0_3 = arith.constant 0 : index
    %c0_4 = arith.constant 0 : index
    %3 = vector.load %arg4[%c0_3, %c0_4] : memref<1x128xf32, #tpu.memory_space<vmem>>, vector<1x128xf32>
    %4 = vector.broadcast %3 : vector<1x128xf32> to vector<32x128xf32>
    %5 = arith.addf %2, %4 : vector<32x128xf32>
    %c0_5 = arith.constant 0 : index
    %c0_6 = arith.constant 0 : index
    %6 = vector.load %arg5[%c0_5, %c0_6] : memref<32x128xf32, #tpu.memory_space<vmem>>, vector<32x128xf32>
    tpu.vector_store %arg5[%c0_5, %c0_6], %5 {strides = array<i32>} : memref<32x128xf32, #tpu.memory_space<vmem>>, vector<32x128xf32>,
    return
  }
  func.func @transform_0(%arg0: i32, %arg1: i32) -> (i32, i32) {
    %c0_i32 = arith.constant 0 : i32
    %c0_i32_0 = arith.constant 0 : i32
    return %arg1, %c0_i32 : i32, i32
  }
  func.func @transform_1(%arg0: i32, %arg1: i32) -> (i32, i32) {
    %c0_i32 = arith.constant 0 : i32
    %c0_i32_0 = arith.constant 0 : i32
    return %arg0, %c0_i32 : i32, i32
  }
  func.func @transform_2(%arg0: i32, %arg1: i32) -> (i32, i32) {
    %c0_i32 = arith.constant 0 : i32
    %c0_i32_0 = arith.constant 0 : i32
    return %c0_i32, %arg0 : i32, i32
  }
  func.func @transform_3(%arg0: i32, %arg1: i32) -> (i32, i32) {
    %c0_i32 = arith.constant 0 : i32
    return %arg1, %arg0 : i32, i32
  }
}

</mosaic_0001>

<llo_original>
// kernel: tpu_custom_call.1
$region0: #{tpu_custom_call.1}
  #allocation0 [shape = 'u32[]', space=smem, size = 0x4, offset = 0x4, fixed_abs, tag = 'smem constant byte address 0x4 - core index']
  #allocation1 [shape = 'u32[144,128]{1,0:T(1,128)}', space=vmem, size = 0x12000, scoped, tag = 'internal scratch']
  %s0 = inlined_call_operand.vmem [shape: bf16[32,64], index: 0, kind: input, shape index: {}]
  %s1 = inlined_call_operand.vmem [shape: bf16[128,64], index: 1, kind: input, shape index: {}]
  %s2 = inlined_call_operand.vmem [shape: f32[1,128], index: 2, kind: input, shape index: {}]
  %s3 = inlined_call_operand.hbm [shape: f32[32,128], index: 3, kind: output, shape index: {}]
  %s4 = sld [smem:[#allocation0]]
  $region22: #{tpu_custom_call.1} parent=0
    _
  %s6 = ssub.s32 1, %s4
  %s7 = scalar_select 0, %s6, %s4
  $region1: #{tpu_custom_call.1} parent=0
    #allocation2 [shape = 'u8[16384]{0}', space=vmem, size = 0x4000, scoped, tag = 'output window, operand 0, single buffered']
    #allocation3 [shape = 's32[1]{0}', space=sflag, size = 0x4, scoped, tag = 'scoped memory for tpu_custom_call.1']
    %8 = vsyncpa [#allocation3], 0
    // Predicated region
    $region2: #{tpu_custom_call.1} parent=1 // pred_check
      _
    $region3: #{tpu_custom_call.1} parent=1 // pred_check_branch
      %10 = sbr.rel (0) target = $region5
    $region4: #{tpu_custom_call.1} parent=1 // pred_region
      _
    $region5: #{tpu_custom_call.1} parent=1 // pred_fallthru
      _
    // Predicated region
    $region6: #{tpu_custom_call.1} parent=1 // pred_check
      _
    $region7: #{tpu_custom_call.1} parent=1 // pred_check_branch
      %12 = sbr.rel (0) target = $region9
    $region8: #{tpu_custom_call.1} parent=1 // pred_region
      _
    $region9: #{tpu_custom_call.1} parent=1 // pred_fallthru
      _
    // Predicated region
    $region10: #{tpu_custom_call.1} parent=1 // pred_check
      _
    $region11: #{tpu_custom_call.1} parent=1 // pred_check_branch
      %14 = sbr.rel (0) target = $region13
    $region12: #{tpu_custom_call.1} parent=1 // pred_region
      _
    $region13: #{tpu_custom_call.1} parent=1 // pred_fallthru
      _
    %v16 = vld [vmem:[%s0] sm:$0xf]
    %v17 = vld [vmem:[%s0 + $0x4] sm:$0xf]
    %v18 = vld [vmem:[%s0 + $0x8] sm:$0xf]
    %v19 = vld [vmem:[%s0 + $0xc] sm:$0xf]
    %v20 = vld [vmem:[%s1] sm:$0xf]
    %v21 = vld [vmem:[%s1 + $0x4] sm:$0xf]
    %v22 = vld [vmem:[%s1 + $0x8] sm:$0xf]
    %v23 = vld [vmem:[%s1 + $0xc] sm:$0xf]
    %v24 = vld [vmem:[%s1 + $0x10] sm:$0xf]
    %v25 = vld [vmem:[%s1 + $0x14] sm:$0xf]
    %v26 = vld [vmem:[%s1 + $0x18] sm:$0xf]
    %v27 = vld [vmem:[%s1 + $0x1c] sm:$0xf]
    %v28 = vld [vmem:[%s1 + $0x20] sm:$0xf]
    %v29 = vld [vmem:[%s1 + $0x24] sm:$0xf]
    %v30 = vld [vmem:[%s1 + $0x28] sm:$0xf]
    %v31 = vld [vmem:[%s1 + $0x2c] sm:$0xf]
    %v32 = vld [vmem:[%s1 + $0x30] sm:$0xf]
    %v33 = vld [vmem:[%s1 + $0x34] sm:$0xf]
    %v34 = vld [vmem:[%s1 + $0x38] sm:$0xf]
    %v35 = vld [vmem:[%s1 + $0x3c] sm:$0xf]
    %v36 = vld [vmem:[%s2] sm:$0x1]
    %v38 = vlaneseq
    %v39 = vshrl.u32 %v38, 7
    %v40 = vsub.s32 0, %v39
    %v41 = vrot.slane %v36, %v40
    %v47 = vunpack.c.l.b16 %v16
    %v48 = vunpack.c.l.b16 %v17
    %v49 = vunpack.c.l.b16 %v18
    %v50 = vunpack.c.l.b16 %v19
    %v51 = vpack.c.b16 %v48, %v47
    %v52 = vpack.c.b16 %v50, %v49
    %v69 = vunpack.c.l.b16 %v20
    %v70 = vunpack.c.l.b16 %v21
    %v71 = vunpack.c.l.b16 %v22
    %v72 = vunpack.c.l.b16 %v23
    %v73 = vunpack.c.l.b16 %v24
    %v74 = vunpack.c.l.b16 %v25
    %v75 = vunpack.c.l.b16 %v26
    %v76 = vunpack.c.l.b16 %v27
    %v77 = vunpack.c.l.b16 %v28
    %v78 = vunpack.c.l.b16 %v29
    %v79 = vunpack.c.l.b16 %v30
    %v80 = vunpack.c.l.b16 %v31
    %v81 = vunpack.c.l.b16 %v32
    %v82 = vunpack.c.l.b16 %v33
    %v83 = vunpack.c.l.b16 %v34
    %v84 = vunpack.c.l.b16 %v35
    %v85 = vpack.c.b16 %v70, %v69
    %v86 = vpack.c.b16 %v72, %v71
    %v87 = vpack.c.b16 %v74, %v73
    %v88 = vpack.c.b16 %v76, %v75
    %v89 = vpack.c.b16 %v78, %v77
    %v90 = vpack.c.b16 %v80, %v79
    %v91 = vpack.c.b16 %v82, %v81
    %v92 = vpack.c.b16 %v84, %v83
    %vm93 = vcmask 523264
    %v95 = vsel %vm93, %v51, 0
    %v98 = vsel %vm93, %v52, 0
    %v101 = vsel %vm93, %v85, 0
    %v104 = vsel %vm93, %v86, 0
    %v107 = vsel %vm93, %v87, 0
    %v110 = vsel %vm93, %v88, 0
    %v113 = vsel %vm93, %v89, 0
    %v116 = vsel %vm93, %v90, 0
    %v119 = vsel %vm93, %v91, 0
    %v122 = vsel %vm93, %v92, 0
    %124 = vmatprep.subr.bf16.mxu0 0
    %125 = vmatpush1.bf16.xpose.msra.mxu0 %v101
    %126 = vmatprep.subr.bf16.mxu0 0
    %127 = vmatpush1.bf16.xpose.msra.mxu0 %v104
    %128 = vmatprep.subr.bf16.mxu0 0
    %129 = vmatpush1.bf16.xpose.msra.mxu0 %v107
    %130 = vmatprep.subr.bf16.mxu0 0
    %131 = vmatpush1.bf16.xpose.msra.mxu0 %v110
    %132 = vmatprep.subr.bf16.mxu0 0
    %133 = vmatpush1.bf16.xpose.msra.mxu0 %v113
    %134 = vmatprep.subr.bf16.mxu0 0
    %135 = vmatpush1.bf16.xpose.msra.mxu0 %v116
    %136 = vmatprep.subr.bf16.mxu0 0
    %137 = vmatpush1.bf16.xpose.msra.mxu0 %v119
    %138 = vmatprep.subr.bf16.mxu0 0
    %139 = vmatpush1.bf16.xpose.msra.mxu0 %v122
    %140 = vmatprep.subr.bf16.mxu0 0
    %141 = vmatpush1.bf16.xpose.msra.mxu0 0
    %142 = vmatprep.subr.bf16.mxu0 0
    %143 = vmatpush1.bf16.xpose.msra.mxu0 0
    %144 = vmatprep.subr.bf16.mxu0 0
    %145 = vmatpush1.bf16.xpose.msra.mxu0 0
    %146 = vmatprep.subr.bf16.mxu0 0
    %147 = vmatpush1.bf16.xpose.msra.mxu0 0
    %148 = vmatprep.subr.bf16.mxu0 0
    %149 = vmatpush1.bf16.xpose.msra.mxu0 0
    %150 = vmatprep.subr.bf16.mxu0 0
    %151 = vmatpush1.bf16.xpose.msra.mxu0 0
    %152 = vmatprep.subr.bf16.mxu0 0
    %153 = vmatpush1.bf16.xpose.msra.mxu0 0
    %154 = vmatprep.subr.bf16.mxu0 0
    %155 = vmatpush1.bf16.xpose.msra.mxu0 0
    %156 = vmatprep.mubr.bf16.mxu0 0
    %157 = vmatmul.mubr.bf16.gmra.mrb[0].mxu0 %v95
    %v158 = vpop.f32.mrb[0].mxu0
    %v159 = vadd.f32 %v41, %v158
    %v160 = vpop.f32.mrb[0].mxu0
    %v161 = vpop.f32.mrb[0].mxu0
    %v162 = vadd.f32 %v41, %v161
    %v163 = vpop.f32.mrb[0].mxu0
    %164 = vmatprep.mubr.bf16.mxu0 0
    %165 = vmatmul.mubr.bf16.gmra.mrb[0].mxu0 %v98
    %v166 = vpop.f32.mrb[0].mxu0
    %v167 = vadd.f32 %v41, %v166
    %v168 = vpop.f32.mrb[0].mxu0
    %v169 = vpop.f32.mrb[0].mxu0
    %v170 = vadd.f32 %v41, %v169
    %v171 = vpop.f32.mrb[0].mxu0
    %172 = vdwg.mxu0
    %173 = vst [vmem:[#allocation2] sm:$0xff] %v159
    %174 = vst [vmem:[#allocation2 + $0x8] sm:$0xff] %v162
    %175 = vst [vmem:[#allocation2 + $0x10] sm:$0xff] %v167
    %176 = vst [vmem:[#allocation2 + $0x18] sm:$0xff] %v170
    // Predicated region
    $region14: #{tpu_custom_call.1} parent=1 // pred_check
      _
    $region15: #{tpu_custom_call.1} parent=1 // pred_check_branch
      %178 = sbr.rel (0) target = $region17
    $region16: #{tpu_custom_call.1} parent=1 // pred_region
      %s180 = ssub.s32 512, 512
      %181 = vsyncadd [#allocation3], %s180
      %s182 = sshll.u32 [#allocation2], 4
      %s183 = int_to_ptr.vmem [resolvable:$true] %s182
      %188 = dma.vmem_to_hbm [thread:$0]  %s183, 512, %s3, [#allocation3], 128, 128, 8
    $region17: #{tpu_custom_call.1} parent=1 // pred_fallthru
      _
    // Predicated region
    $region18: #{tpu_custom_call.1} parent=1 // pred_check
      _
    $region19: #{tpu_custom_call.1} parent=1 // pred_check_branch
      %190 = sbr.rel (0) target = $region21
    $region20: #{tpu_custom_call.1} parent=1 // pred_region
      %191 = dma.done [#allocation3], 512
    $region21: #{tpu_custom_call.1} parent=1 // pred_fallthru
      _
    %192 = vsyncpa [#allocation3], 1

</llo_original>
